<compile_context>
chip_gen: v5e
topology: v5e:2x2
jax: 0.10.0
libtpu: 0.0.40
codegen_flags: <defaults>
</compile_context>

<pallas_src>
import functools

import jax
import jax.numpy as jnp
import numpy as np
from jax.experimental import pallas as pl
from jax.experimental.pallas import tpu as pltpu


# ----------------------------- Pallas kernels --------------------------------
def qkv_proj_kernel(x_ref, w_ref, b_ref, qkv_ref):
    """Fused Q/K/V projection: (B*L, D) @ (D, 3D) + bias -> (B*L, 3D)."""
    qkv_ref[...] = (
        jnp.dot(x_ref[...], w_ref[...], preferred_element_type=jnp.float32)
        + b_ref[...]
    )


def attn_kernel(q_ref, k_ref, v_ref, mask_ref, attn_ref, ctx_ref, *, scale):
    """Scaled-dot-product attention for one batch element (all pseudo-heads).

    q_ref/k_ref/v_ref : (head_num, L, head_dim)
    mask_ref          : (head_num, L, L)  float, >0 means "masked"
    attn_ref          : (head_num, L, L)  softmax probabilities (returned)
    ctx_ref           : (head_num, L, head_dim)  attention output
    """
    q = q_ref[...]
    k = k_ref[...]
    v = v_ref[...]

    s = jnp.einsum("hld,hmd->hlm", q, k, preferred_element_type=jnp.float32)
    s = s * scale
    s = jnp.where(mask_ref[...] > 0.0, -jnp.inf, s)

    # softmax(dim=-1); every row has >=1 unmasked key so the max is finite.
    m = jnp.max(s, axis=-1, keepdims=True)
    e = jnp.exp(s - m)
    p = e / jnp.sum(e, axis=-1, keepdims=True)

    attn_ref[...] = p
    ctx_ref[...] = jnp.einsum("hlm,hmd->hld", p, v,
                              preferred_element_type=jnp.float32)


def out_proj_kernel(ctx_ref, w_ref, b_ref, pad_ref, x_ref, gamma_ref, o_ref):
    """Fused epilogue: out = gamma * (non_pad_mask * (ctx @ Wo + bo)) + x."""
    proj = (
        jnp.dot(ctx_ref[...], w_ref[...], preferred_element_type=jnp.float32)
        + b_ref[...]
    )
    gamma = gamma_ref[0]  # scalar from SMEM
    o_ref[...] = gamma * (pad_ref[...] * proj) + x_ref[...]


# ------------------------------- JAX wrapper ----------------------------------
def multi_attn_forward(x, attn_mask, non_pad_mask, params, head_num):
    """Matches MultiAttn.forward. Returns (out, attn)."""
    B, L, D = x.shape
    assert D % head_num == 0
    head_dim = D // head_num
    scale = float(head_dim) ** -0.5
    BH = B * head_num

    x2d = x.reshape(B * L, D)

    # ---- fused QKV projection (one big matmul) ----
    w_qkv = jnp.concatenate([params["wq"], params["wk"], params["wv"]], axis=1)  # (D, 3D)
    b_qkv = jnp.concatenate([params["bq"], params["bk"], params["bv"]], axis=1)  # (1, 3D)

    vmem = pl.BlockSpec(memory_space=pltpu.MemorySpace.VMEM)
    qkv2d = pl.pallas_call(
        qkv_proj_kernel,
        out_shape=jax.ShapeDtypeStruct((B * L, 3 * D), jnp.float32),
        in_specs=[vmem, vmem, vmem],
        out_specs=vmem,
    )(x2d, w_qkv, b_qkv)

    # Head split with the original module's .view semantics (flat reshape).
    q = qkv2d[:, 0 * D:1 * D].reshape(BH, L, head_dim)
    k = qkv2d[:, 1 * D:2 * D].reshape(BH, L, head_dim)
    v = qkv2d[:, 2 * D:3 * D].reshape(BH, L, head_dim)

    # attn_mask.repeat(head_num, 1, 1) == jnp.tile along axis 0.
    mask_f = jnp.tile(attn_mask.astype(jnp.float32), (head_num, 1, 1))  # (BH, L, L)

    # ---- attention: grid over batch, all heads of a batch per step ----
    attn, ctx = pl.pallas_call(
        functools.partial(attn_kernel, scale=scale),
        out_shape=(
            jax.ShapeDtypeStruct((BH, L, L), jnp.float32),
            jax.ShapeDtypeStruct((BH, L, head_dim), jnp.float32),
        ),
        grid=(B,),
        in_specs=[
            pl.BlockSpec((head_num, L, head_dim), lambda b: (b, 0, 0)),
            pl.BlockSpec((head_num, L, head_dim), lambda b: (b, 0, 0)),
            pl.BlockSpec((head_num, L, head_dim), lambda b: (b, 0, 0)),
            pl.BlockSpec((head_num, L, L), lambda b: (b, 0, 0)),
        ],
        out_specs=(
            pl.BlockSpec((head_num, L, L), lambda b: (b, 0, 0)),
            pl.BlockSpec((head_num, L, head_dim), lambda b: (b, 0, 0)),
        ),
        compiler_params=pltpu.CompilerParams(dimension_semantics=("parallel",)),
    )(q, k, v, mask_f)

    # out.view(B, L, head_dim * head_num) is again a flat reshape.
    ctx2d = ctx.reshape(B * L, D)
    pad2d = non_pad_mask.reshape(B * L, 1).astype(jnp.float32)
    gamma1 = params["gamma"].reshape(1).astype(jnp.float32)

    # ---- fused output projection + mask + gamma residual ----
    smem = pl.BlockSpec(memory_space=pltpu.MemorySpace.SMEM)
    out2d = pl.pallas_call(
        out_proj_kernel,
        out_shape=jax.ShapeDtypeStruct((B * L, D), jnp.float32),
        in_specs=[vmem, vmem, vmem, vmem, vmem, smem],
        out_specs=vmem,
    )(ctx2d, params["wo"], params["bo"], pad2d, x2d, gamma1)

    return out2d.reshape(B, L, D), attn


# ----------------------------- pure-JAX reference -----------------------------
def multi_attn_ref(x, attn_mask, non_pad_mask, params, head_num):
    B, L, D = x.shape
    head_dim = D // head_num
    scale = float(head_dim) ** -0.5

    q = (x @ params["wq"] + params["bq"]).reshape(B * head_num, L, head_dim)
    k = (x @ params["wk"] + params["bk"]).reshape(B * head_num, L, head_dim)
    v = (x @ params["wv"] + params["bv"]).reshape(B * head_num, L, head_dim)

    mask = jnp.tile(attn_mask, (head_num, 1, 1))                  # bool (BH, L, L)
    s = scale * jnp.einsum("bld,bmd->blm", q, k)
    s = jnp.where(mask, -jnp.inf, s)
    m = jnp.max(s, axis=-1, keepdims=True)
    e = jnp.exp(s - m)
    attn = e / jnp.sum(e, axis=-1, keepdims=True)

    out = jnp.einsum("blm,bmd->bld", attn, v).reshape(B, L, D)
    out = out @ params["wo"] + params["bo"]
    out = non_pad_mask * out
    out = params["gamma"] * out + x
    return out, attn


# -------------------------- deterministic params ------------------------------
def init_params(key, in_dim, head_num):
    """PyTorch nn.Linear-style uniform(-1/sqrt(in), 1/sqrt(in)); weights stored
    already transposed as (in, out) so the kernel computes x @ W."""
    head_dim = in_dim // head_num
    proj_dim = head_num * head_dim
    bnd = 1.0 / np.sqrt(in_dim)
    ks = jax.random.split(key, 8)
    params = {
        "wq": jax.random.uniform(ks[0], (in_dim, proj_dim), jnp.float32, -bnd, bnd),
        "bq": jax.random.uniform(ks[1], (1, proj_dim), jnp.float32, -bnd, bnd),
        "wk": jax.random.uniform(ks[2], (in_dim, proj_dim), jnp.float32, -bnd, bnd),
        "bk": jax.random.uniform(ks[3], (1, proj_dim), jnp.float32, -bnd, bnd),
        "wv": jax.random.uniform(ks[4], (in_dim, proj_dim), jnp.float32, -bnd, bnd),
        "bv": jax.random.uniform(ks[5], (1, proj_dim), jnp.float32, -bnd, bnd),
        "wo": jax.random.uniform(ks[6], (proj_dim, in_dim), jnp.float32, -bnd, bnd),
        "bo": jax.random.uniform(ks[7], (1, in_dim), jnp.float32, -bnd, bnd),
        # Spec initializes gamma to 0 (which makes out == x); use a nonzero
        # value so the attention path is actually exercised in the check.
        "gamma": jnp.float32(0.5),
    }
    return params


# ----------------------------------- main --------------------------------------
if __name__ == "__main__":
    B, L, IN_DIM, HEAD_NUM = 2, 8, 32, 4   # head_dim = 8

    root = jax.random.PRNGKey(0)
    k_x, k_p = jax.random.split(root, 2)

    # Padding: sequence lengths per batch element.
    length = jnp.array([L, 5], dtype=jnp.int32)
    pos = jnp.arange(L)
    key_pad = pos[None, :] >= length[:, None]                               # (B, L) bool
    attn_mask = jnp.broadcast_to(key_pad[:, None, :], (B, L, L))            # (B, L, L) bool
    non_pad_mask = (pos[None, :] < length[:, None]).astype(jnp.float32)[..., None]  # (B, L, 1)

    x = jax.random.normal(k_x, (B, L, IN_DIM), jnp.float32)
    params = init_params(k_p, IN_DIM, HEAD_NUM)

    fwd = jax.jit(functools.partial(multi_attn_forward, head_num=HEAD_NUM))
    out, attn = fwd(x, attn_mask, non_pad_mask, params)
    out = jax.block_until_ready(out)
    attn = jax.block_until_ready(attn)

    assert out.shape == (B, L, IN_DIM), out.shape
    assert attn.shape == (B * HEAD_NUM, L, L), attn.shape

    ref_out, ref_attn = multi_attn_ref(x, attn_mask, non_pad_mask, params, HEAD_NUM)
    np.testing.assert_allclose(np.asarray(out), np.asarray(ref_out), rtol=1e-5, atol=1e-5)
    np.testing.assert_allclose(np.asarray(attn), np.asarray(ref_attn), rtol=1e-5, atol=1e-5)

    print("KERNEL_OK")
</pallas_src>

<mosaic_0001>
module attributes {stable_mosaic.version = 11 : i64} {
  func.func @qkv_proj_kernel(%arg0: memref<16x32xf32, #tpu.memory_space<vmem>>, %arg1: memref<32x96xf32, #tpu.memory_space<vmem>>, %arg2: memref<1x96xf32, #tpu.memory_space<vmem>>, %arg3: memref<16x96xf32, #tpu.memory_space<vmem>>) attributes {dimension_semantics = [], scalar_prefetch = 0 : i64, scratch_operands = 0 : i64, tpu.core_type = #tpu.core_type<tc>} {
    %c0 = arith.constant 0 : index
    %c0_0 = arith.constant 0 : index
    %0 = vector.load %arg0[%c0, %c0_0] : memref<16x32xf32, #tpu.memory_space<vmem>>, vector<16x32xf32>
    %c0_1 = arith.constant 0 : index
    %c0_2 = arith.constant 0 : index
    %1 = vector.load %arg1[%c0_1, %c0_2] : memref<32x96xf32, #tpu.memory_space<vmem>>, vector<32x96xf32>
    %cst = arith.constant dense<0.000000e+00> : vector<16x96xf32>
    %2 = tpu.matmul %0, %1, %cst {dimension_numbers = #tpu.dot_dimension_numbers<[1], [0], [0], [1], [0, 0, 1, 1], [], []>} : vector<16x32xf32>, vector<32x96xf32>, vector<16x96xf32> -> vector<16x96xf32>
    %c0_3 = arith.constant 0 : index
    %c0_4 = arith.constant 0 : index
    %3 = vector.load %arg2[%c0_3, %c0_4] : memref<1x96xf32, #tpu.memory_space<vmem>>, vector<1x96xf32>
    %4 = vector.broadcast %3 : vector<1x96xf32> to vector<16x96xf32>
    %5 = arith.addf %2, %4 : vector<16x96xf32>
    %c0_5 = arith.constant 0 : index
    %c0_6 = arith.constant 0 : index
    %6 = vector.load %arg3[%c0_5, %c0_6] : memref<16x96xf32, #tpu.memory_space<vmem>>, vector<16x96xf32>
    tpu.vector_store %arg3[%c0_5, %c0_6], %5 {strides = array<i32>} : memref<16x96xf32, #tpu.memory_space<vmem>>, vector<16x96xf32>,
    return
  }
}

module attributes {stable_mosaic.version = 11 : i64} {
  func.func @attn_kernel(%arg0: i32, %arg1: memref<4x8x8xf32, #tpu.memory_space<vmem>>, %arg2: memref<4x8x8xf32, #tpu.memory_space<vmem>>, %arg3: memref<4x8x8xf32, #tpu.memory_space<vmem>>, %arg4: memref<4x8x8xf32, #tpu.memory_space<vmem>>, %arg5: memref<4x8x8xf32, #tpu.memory_space<vmem>>, %arg6: memref<4x8x8xf32, #tpu.memory_space<vmem>>) attributes {dimension_semantics = [#tpu.dimension_semantics<parallel>], iteration_bounds = array<i64: 2>, scalar_prefetch = 0 : i64, scratch_operands = 0 : i64, tpu.core_type = #tpu.core_type<tc>, window_params = [{transform_indices = @transform_0, window_bounds = array<i64: 4, 8, 8>}, {transform_indices = @transform_1, window_bounds = array<i64: 4, 8, 8>}, {transform_indices = @transform_2, window_bounds = array<i64: 4, 8, 8>}, {transform_indices = @transform_3, window_bounds = array<i64: 4, 8, 8>}, {transform_indices = @transform_4, window_bounds = array<i64: 4, 8, 8>}, {transform_indices = @transform_5, window_bounds = array<i64: 4, 8, 8>}]} {
    %c0 = arith.constant 0 : index
    %c0_0 = arith.constant 0 : index
    %c0_1 = arith.constant 0 : index
    %0 = vector.load %arg1[%c0, %c0_0, %c0_1] : memref<4x8x8xf32, #tpu.memory_space<vmem>>, vector<4x8x8xf32>
    %c0_2 = arith.constant 0 : index
    %c0_3 = arith.constant 0 : index
    %c0_4 = arith.constant 0 : index
    %1 = vector.load %arg2[%c0_2, %c0_3, %c0_4] : memref<4x8x8xf32, #tpu.memory_space<vmem>>, vector<4x8x8xf32>
    %c0_5 = arith.constant 0 : index
    %c0_6 = arith.constant 0 : index
    %c0_7 = arith.constant 0 : index
    %2 = vector.load %arg3[%c0_5, %c0_6, %c0_7] : memref<4x8x8xf32, #tpu.memory_space<vmem>>, vector<4x8x8xf32>
    "tpu.trace_start"() <{level = 10 : i32, message = "hld,hmd->hlm"}> : () -> ()
    %cst = arith.constant dense<0.000000e+00> : vector<4x8x8xf32>
    %3 = tpu.matmul %0, %1, %cst {dimension_numbers = #tpu.dot_dimension_numbers<[2], [2], [1], [1], [0, 0, 0, 1, 1, 1], [0], [0]>} : vector<4x8x8xf32>, vector<4x8x8xf32>, vector<4x8x8xf32> -> vector<4x8x8xf32>
    "tpu.trace_stop"() : () -> ()
    %cst_8 = arith.constant 0.353553385 : f32
    %4 = vector.broadcast %cst_8 : f32 to vector<4x8x8xf32>
    %5 = arith.mulf %3, %4 : vector<4x8x8xf32>
    %c0_9 = arith.constant 0 : index
    %c0_10 = arith.constant 0 : index
    %c0_11 = arith.constant 0 : index
    %6 = vector.load %arg4[%c0_9, %c0_10, %c0_11] : memref<4x8x8xf32, #tpu.memory_space<vmem>>, vector<4x8x8xf32>
    %cst_12 = arith.constant 0.000000e+00 : f32
    %7 = vector.broadcast %cst_12 : f32 to vector<4x8x8xf32>
    %8 = arith.cmpf ogt, %6, %7 : vector<4x8x8xf32>
    %cst_13 = arith.constant 0xFF800000 : f32
    %9 = vector.broadcast %cst_13 : f32 to vector<4x8x8xf32>
    %10 = arith.select %8, %9, %5 : vector<4x8x8xi1>, vector<4x8x8xf32>
    %cst_14 = arith.constant dense<0xFF800000> : vector<4x8xf32>
    %11 = vector.multi_reduction <maximumf>, %10, %cst_14 [2] : vector<4x8x8xf32> to vector<4x8xf32>
    %12 = vector.shape_cast %11 : vector<4x8xf32> to vector<4x8x1xf32>
    %13 = vector.broadcast %12 : vector<4x8x1xf32> to vector<4x8x8xf32>
    %14 = arith.subf %10, %13 : vector<4x8x8xf32>
    %15 = math.exp %14 : vector<4x8x8xf32>
    %cst_15 = arith.constant dense<0.000000e+00> : vector<4x8xf32>
    %16 = vector.multi_reduction <add>, %15, %cst_15 [2] : vector<4x8x8xf32> to vector<4x8xf32>
    %17 = vector.shape_cast %16 : vector<4x8xf32> to vector<4x8x1xf32>
    %18 = vector.broadcast %17 : vector<4x8x1xf32> to vector<4x8x8xf32>
    %19 = arith.divf %15, %18 : vector<4x8x8xf32>
    %c0_16 = arith.constant 0 : index
    %c0_17 = arith.constant 0 : index
    %c0_18 = arith.constant 0 : index
    %20 = vector.load %arg5[%c0_16, %c0_17, %c0_18] : memref<4x8x8xf32, #tpu.memory_space<vmem>>, vector<4x8x8xf32>
    tpu.vector_store %arg5[%c0_16, %c0_17, %c0_18], %19 {strides = array<i32>} : memref<4x8x8xf32, #tpu.memory_space<vmem>>, vector<4x8x8xf32>,
    "tpu.trace_start"() <{level = 10 : i32, message = "hlm,hmd->hld"}> : () -> ()
    %cst_19 = arith.constant dense<0.000000e+00> : vector<4x8x8xf32>
    %21 = tpu.matmul %19, %2, %cst_19 {dimension_numbers = #tpu.dot_dimension_numbers<[2], [1], [1], [2], [0, 0, 0, 1, 1, 2], [0], [0]>} : vector<4x8x8xf32>, vector<4x8x8xf32>, vector<4x8x8xf32> -> vector<4x8x8xf32>
    "tpu.trace_stop"() : () -> ()
    %c0_20 = arith.constant 0 : index
    %c0_21 = arith.constant 0 : index
    %c0_22 = arith.constant 0 : index
    %22 = vector.load %arg6[%c0_20, %c0_21, %c0_22] : memref<4x8x8xf32, #tpu.memory_space<vmem>>, vector<4x8x8xf32>
    tpu.vector_store %arg6[%c0_20, %c0_21, %c0_22], %21 {strides = array<i32>} : memref<4x8x8xf32, #tpu.memory_space<vmem>>, vector<4x8x8xf32>,
    return
  }
  func.func @transform_0(%arg0: i32) -> (i32, i32, i32) {
    %c0_i32 = arith.constant 0 : i32
    %c0_i32_0 = arith.constant 0 : i32
    %c0_i32_1 = arith.constant 0 : i32
    return %arg0, %c0_i32, %c0_i32_0 : i32, i32, i32
  }
  func.func @transform_1(%arg0: i32) -> (i32, i32, i32) {
    %c0_i32 = arith.constant 0 : i32
    %c0_i32_0 = arith.constant 0 : i32
    %c0_i32_1 = arith.constant 0 : i32
    return %arg0, %c0_i32, %c0_i32_0 : i32, i32, i32
  }
  func.func @transform_2(%arg0: i32) -> (i32, i32, i32) {
    %c0_i32 = arith.constant 0 : i32
    %c0_i32_0 = arith.constant 0 : i32
    %c0_i32_1 = arith.constant 0 : i32
    return %arg0, %c0_i32, %c0_i32_0 : i32, i32, i32
  }
  func.func @transform_3(%arg0: i32) -> (i32, i32, i32) {
    %c0_i32 = arith.constant 0 : i32
    %c0_i32_0 = arith.constant 0 : i32
    %c0_i32_1 = arith.constant 0 : i32
    return %arg0, %c0_i32, %c0_i32_0 : i32, i32, i32
  }
  func.func @transform_4(%arg0: i32) -> (i32, i32, i32) {
    %c0_i32 = arith.constant 0 : i32
    %c0_i32_0 = arith.constant 0 : i32
    %c0_i32_1 = arith.constant 0 : i32
    return %arg0, %c0_i32, %c0_i32_0 : i32, i32, i32
  }
  func.func @transform_5(%arg0: i32) -> (i32, i32, i32) {
    %c0_i32 = arith.constant 0 : i32
    %c0_i32_0 = arith.constant 0 : i32
    %c0_i32_1 = arith.constant 0 : i32
    return %arg0, %c0_i32, %c0_i32_0 : i32, i32, i32
  }
}

module attributes {stable_mosaic.version = 11 : i64} {
  func.func @out_proj_kernel(%arg0: memref<16x32xf32, #tpu.memory_space<vmem>>, %arg1: memref<32x32xf32, #tpu.memory_space<vmem>>, %arg2: memref<1x32xf32, #tpu.memory_space<vmem>>, %arg3: memref<16x1xf32, #tpu.memory_space<vmem>>, %arg4: memref<16x32xf32, #tpu.memory_space<vmem>>, %arg5: memref<1xf32, #tpu.memory_space<smem>>, %arg6: memref<16x32xf32, #tpu.memory_space<vmem>>) attributes {dimension_semantics = [], scalar_prefetch = 0 : i64, scratch_operands = 0 : i64, tpu.core_type = #tpu.core_type<tc>} {
    %c0 = arith.constant 0 : index
    %c0_0 = arith.constant 0 : index
    %0 = vector.load %arg0[%c0, %c0_0] : memref<16x32xf32, #tpu.memory_space<vmem>>, vector<16x32xf32>
    %c0_1 = arith.constant 0 : index
    %c0_2 = arith.constant 0 : index
    %1 = vector.load %arg1[%c0_1, %c0_2] : memref<32x32xf32, #tpu.memory_space<vmem>>, vector<32x32xf32>
    %cst = arith.constant dense<0.000000e+00> : vector<16x32xf32>
    %2 = tpu.matmul %0, %1, %cst {dimension_numbers = #tpu.dot_dimension_numbers<[1], [0], [0], [1], [0, 0, 1, 1], [], []>} : vector<16x32xf32>, vector<32x32xf32>, vector<16x32xf32> -> vector<16x32xf32>
    %c0_3 = arith.constant 0 : index
    %c0_4 = arith.constant 0 : index
    %3 = vector.load %arg2[%c0_3, %c0_4] : memref<1x32xf32, #tpu.memory_space<vmem>>, vector<1x32xf32>
    %4 = vector.broadcast %3 : vector<1x32xf32> to vector<16x32xf32>
    %5 = arith.addf %2, %4 : vector<16x32xf32>
    %c0_5 = arith.constant 0 : index
    %6 = memref.load %arg5[%c0_5] : memref<1xf32, #tpu.memory_space<smem>>
    %c0_6 = arith.constant 0 : index
    %c0_7 = arith.constant 0 : index
    %7 = vector.load %arg3[%c0_6, %c0_7] : memref<16x1xf32, #tpu.memory_space<vmem>>, vector<16x1xf32>
    %8 = vector.broadcast %7 : vector<16x1xf32> to vector<16x32xf32>
    %9 = arith.mulf %8, %5 : vector<16x32xf32>
    %10 = vector.broadcast %6 : f32 to vector<16x32xf32>
    %11 = arith.mulf %10, %9 : vector<16x32xf32>
    %c0_8 = arith.constant 0 : index
    %c0_9 = arith.constant 0 : index
    %12 = vector.load %arg4[%c0_8, %c0_9] : memref<16x32xf32, #tpu.memory_space<vmem>>, vector<16x32xf32>
    %13 = arith.addf %11, %12 : vector<16x32xf32>
    %c0_10 = arith.constant 0 : index
    %c0_11 = arith.constant 0 : index
    %14 = vector.load %arg6[%c0_10, %c0_11] : memref<16x32xf32, #tpu.memory_space<vmem>>, vector<16x32xf32>
    tpu.vector_store %arg6[%c0_10, %c0_11], %13 {strides = array<i32>} : memref<16x32xf32, #tpu.memory_space<vmem>>, vector<16x32xf32>,
    return
  }
}

</mosaic_0001>

<llo_original>
// kernel: multi_attn_forward.3
$region0: #{multi_attn_forward.3}
  #allocation0 [shape = 'u32[]', space=smem, size = 0x4, offset = 0x4, fixed_abs, tag = 'smem constant byte address 0x4 - core index']
  #allocation1 [shape = 'u32[72,128]{1,0:T(1,128)}', space=vmem, size = 0x9000, scoped, tag = 'internal scratch']
  %s0 = inlined_call_operand.vmem [shape: f32[16,32], index: 0, kind: input, shape index: {}]
  %s1 = inlined_call_operand.vmem [shape: f32[32,96], index: 1, kind: input, shape index: {}]
  %s2 = inlined_call_operand.vmem [shape: f32[1,96], index: 2, kind: input, shape index: {}]
  %s3 = inlined_call_operand.vmem [shape: f32[16,96], index: 3, kind: output, shape index: {}]
  %s4 = sld [smem:[#allocation0]]
  $region22: #{multi_attn_forward.3} parent=0
    _
  %s6 = ssub.s32 1, %s4
  %s7 = scalar_select 0, %s6, %s4
  // Predicated region
  $region2: #{multi_attn_forward.3} parent=0 // pred_check
    _
  $region3: #{multi_attn_forward.3} parent=0 // pred_check_branch
    %9 = sbr.rel (0) target = $region5
  $region4: #{multi_attn_forward.3} parent=0 // pred_region
    _
  $region5: #{multi_attn_forward.3} parent=0 // pred_fallthru
    _
  // Predicated region
  $region6: #{multi_attn_forward.3} parent=0 // pred_check
    _
  $region7: #{multi_attn_forward.3} parent=0 // pred_check_branch
    %11 = sbr.rel (0) target = $region9
  $region8: #{multi_attn_forward.3} parent=0 // pred_region
    _
  $region9: #{multi_attn_forward.3} parent=0 // pred_fallthru
    _
  // Predicated region
  $region10: #{multi_attn_forward.3} parent=0 // pred_check
    _
  $region11: #{multi_attn_forward.3} parent=0 // pred_check_branch
    %13 = sbr.rel (0) target = $region13
  $region12: #{multi_attn_forward.3} parent=0 // pred_region
    _
  $region13: #{multi_attn_forward.3} parent=0 // pred_fallthru
    _
  %v14 = vld [vmem:[%s0] sm:$0xff]
  %v15 = vld [vmem:[%s0 + $0x8] sm:$0xff]
  %v16 = vld [vmem:[%s1] sm:$0xff]
  %v17 = vld [vmem:[%s1 + $0x8] sm:$0xff]
  %v18 = vld [vmem:[%s1 + $0x10] sm:$0xff]
  %v19 = vld [vmem:[%s1 + $0x18] sm:$0xff]
  %v20 = vld [vmem:[%s2] sm:$0x1]
  %v22 = vperm.slane %v20, 0
  %vm24 = vcmask 261120
  %v26 = vsel %vm24, %v14, 0
  %v29 = vsel %vm24, %v15, 0
  %31 = vmatpush.msra.mxu0 0.0
  %32 = vmatpush.msra.mxu0 0.0
  %33 = vmatpush.msra.mxu0 0.0
  %34 = vmatpush.msra.mxu0 0.0
  %35 = vmatpush.msra.mxu0 0.0
  %36 = vmatpush.msra.mxu0 0.0
  %37 = vmatpush.msra.mxu0 0.0
  %38 = vmatpush.msra.mxu0 0.0
  %39 = vmatpush.msra.mxu0 0.0
  %40 = vmatpush.msra.mxu0 0.0
  %41 = vmatpush.msra.mxu0 0.0
  %42 = vmatpush.msra.mxu0 0.0
  %43 = vmatpush.msra.mxu0 %v19
  %44 = vmatpush.msra.mxu0 %v18
  %45 = vmatpush.msra.mxu0 %v17
  %46 = vmatpush.msra.mxu0 %v16
  %47 = vmatmul.f32.gmra.mxu0 %v26
  %v48 = vpop.f32.mrf.mxu0
  %v49 = vadd.f32 %v22, %v48
  %50 = vmatmul.f32.gmra.mxu0 %v29
  %v51 = vpop.f32.mrf.mxu0
  %v52 = vadd.f32 %v22, %v51
  %53 = vdwg.mxu0
  %vm54 = vcmask 785408
  %55 = vst.msk [vmem:[%s3] sm:$0xff] %vm54, %v49
  %56 = vst.msk [vmem:[%s3 + $0x8] sm:$0xff] %vm54, %v52
  // Predicated region
  $region14: #{multi_attn_forward.3} parent=0 // pred_check
    _
  $region15: #{multi_attn_forward.3} parent=0 // pred_check_branch
    %58 = sbr.rel (0) target = $region17
  $region16: #{multi_attn_forward.3} parent=0 // pred_region
    _
  $region17: #{multi_attn_forward.3} parent=0 // pred_fallthru
    _
  // Predicated region
  $region18: #{multi_attn_forward.3} parent=0 // pred_check
    _
  $region19: #{multi_attn_forward.3} parent=0 // pred_check_branch
    %60 = sbr.rel (0) target = $region21
  $region20: #{multi_attn_forward.3} parent=0 // pred_region
    _
  $region21: #{multi_attn_forward.3} parent=0 // pred_fallthru
    _

// kernel: multi_attn_forward.5
$region0: #{multi_attn_forward.5}
  #allocation0 [shape = 'u32[]', space=smem, size = 0x4, offset = 0x4, fixed_abs, tag = 'smem constant byte address 0x4 - core index']
  #allocation1 [shape = 'u32[72,128]{1,0:T(1,128)}', space=vmem, size = 0x9000, scoped, tag = 'internal scratch']
  #allocation2 [shape = 'f32[1]{0:T(128)S(6)}', space=smem, size = 0x200, scoped, tag = 'scoped memory for multi_attn_forward.5']
  %s0 = inlined_call_operand.vmem [shape: f32[16,32], index: 0, kind: input, shape index: {}]
  %s1 = inlined_call_operand.vmem [shape: f32[32,32], index: 1, kind: input, shape index: {}]
  %s2 = inlined_call_operand.vmem [shape: f32[1,32], index: 2, kind: input, shape index: {}]
  %s3 = inlined_call_operand.vmem [shape: f32[16,1], index: 3, kind: input, shape index: {}]
  %s4 = inlined_call_operand.vmem [shape: f32[16,32], index: 4, kind: input, shape index: {}]
  %s5 = inlined_call_operand.<no memory space> [shape: f32[1], index: 5, kind: input, shape index: {}]
  %s6 = inlined_call_operand.hbm [shape: f32[16,32], index: 6, kind: output, shape index: {}]
  %s7 = sld [smem:[#allocation0]]
  $region34: #{multi_attn_forward.5} parent=0
    _
  %s9 = ssub.s32 1, %s7
  %s10 = scalar_select 0, %s9, %s7
  %11 = sst [smem:[#allocation2]] %s5
  $region1: #{multi_attn_forward.5} parent=0
    #allocation3 [shape = 'u8[8192]{0}', space=vmem, size = 0x2000, scoped, tag = 'output window, operand 0, single buffered']
    #allocation4 [shape = 's32[1]{0}', space=sflag, size = 0x4, scoped, tag = 'scoped memory for multi_attn_forward.5']
    %12 = vsyncpa [#allocation4], 0
    // Predicated region
    $region2: #{multi_attn_forward.5} parent=1 // pred_check
      _
    $region3: #{multi_attn_forward.5} parent=1 // pred_check_branch
      %14 = sbr.rel (0) target = $region5
    $region4: #{multi_attn_forward.5} parent=1 // pred_region
      _
    $region5: #{multi_attn_forward.5} parent=1 // pred_fallthru
      _
    // Predicated region
    $region6: #{multi_attn_forward.5} parent=1 // pred_check
      _
    $region7: #{multi_attn_forward.5} parent=1 // pred_check_branch
      %16 = sbr.rel (0) target = $region9
    $region8: #{multi_attn_forward.5} parent=1 // pred_region
      _
    $region9: #{multi_attn_forward.5} parent=1 // pred_fallthru
      _
    // Predicated region
    $region10: #{multi_attn_forward.5} parent=1 // pred_check
      _
    $region11: #{multi_attn_forward.5} parent=1 // pred_check_branch
      %18 = sbr.rel (0) target = $region13
    $region12: #{multi_attn_forward.5} parent=1 // pred_region
      _
    $region13: #{multi_attn_forward.5} parent=1 // pred_fallthru
      _
    // Predicated region
    $region14: #{multi_attn_forward.5} parent=1 // pred_check
      _
    $region15: #{multi_attn_forward.5} parent=1 // pred_check_branch
      %20 = sbr.rel (0) target = $region17
    $region16: #{multi_attn_forward.5} parent=1 // pred_region
      _
    $region17: #{multi_attn_forward.5} parent=1 // pred_fallthru
      _
    // Predicated region
    $region18: #{multi_attn_forward.5} parent=1 // pred_check
      _
    $region19: #{multi_attn_forward.5} parent=1 // pred_check_branch
      %22 = sbr.rel (0) target = $region21
    $region20: #{multi_attn_forward.5} parent=1 // pred_region
      _
    $region21: #{multi_attn_forward.5} parent=1 // pred_fallthru
      _
    // Predicated region
    $region22: #{multi_attn_forward.5} parent=1 // pred_check
      _
    $region23: #{multi_attn_forward.5} parent=1 // pred_check_branch
      %24 = sbr.rel (0) target = $region25
    $region24: #{multi_attn_forward.5} parent=1 // pred_region
      _
    $region25: #{multi_attn_forward.5} parent=1 // pred_fallthru
      _
    %v25 = vld [vmem:[%s0] sm:$0xff]
    %v26 = vld [vmem:[%s0 + $0x8] sm:$0xff]
    %v27 = vld [vmem:[%s1] sm:$0xff]
    %v28 = vld [vmem:[%s1 + $0x8] sm:$0xff]
    %v29 = vld [vmem:[%s1 + $0x10] sm:$0xff]
    %v30 = vld [vmem:[%s1 + $0x18] sm:$0xff]
    %v31 = vld [vmem:[%s2] sm:$0x1]
    %v33 = vperm.slane %v31, 0
    %vm35 = vcmask 261120
    %v37 = vsel %vm35, %v25, 0
    %v40 = vsel %vm35, %v26, 0
    %42 = vmatpush.msra.mxu0 0.0
    %43 = vmatpush.msra.mxu0 0.0
    %44 = vmatpush.msra.mxu0 0.0
    %45 = vmatpush.msra.mxu0 0.0
    %46 = vmatpush.msra.mxu0 0.0
    %47 = vmatpush.msra.mxu0 0.0
    %48 = vmatpush.msra.mxu0 0.0
    %49 = vmatpush.msra.mxu0 0.0
    %50 = vmatpush.msra.mxu0 0.0
    %51 = vmatpush.msra.mxu0 0.0
    %52 = vmatpush.msra.mxu0 0.0
    %53 = vmatpush.msra.mxu0 0.0
    %54 = vmatpush.msra.mxu0 %v30
    %55 = vmatpush.msra.mxu0 %v29
    %56 = vmatpush.msra.mxu0 %v28
    %57 = vmatpush.msra.mxu0 %v27
    %58 = vmatmul.f32.gmra.mxu0 %v37
    %v59 = vpop.f32.mrf.mxu0
    %v60 = vadd.f32 %v33, %v59
    %61 = vmatmul.f32.gmra.mxu0 %v40
    %v62 = vpop.f32.mrf.mxu0
    %v63 = vadd.f32 %v33, %v62
    %64 = vdwg.mxu0
    %s65 = sld [smem:[#allocation2]]
    %v66 = vld [vmem:[%s3] sm:$0xff]
    %v67 = vld [vmem:[%s3 + $0x8] sm:$0xff]
    %69 = vset.pattern.permute.xlu0 0
    %70 = vperm.xlu0 %69, %v66
    %v71 = vpop.permute.xlu0 %70
    %74 = vset.pattern.permute.xlu0 0
    %75 = vperm.xlu0 %74, %v67
    %v76 = vpop.permute.xlu0 %75
    %v78 = vmul.f32 %v71, %v60
    %v79 = vmul.f32 %v76, %v63
    %v80 = vstv %s65
    %v81 = vmul.f32 %v80, %v78
    %v82 = vmul.f32 %v80, %v79
    %v83 = vld [vmem:[%s4] sm:$0xff]
    %v84 = vld [vmem:[%s4 + $0x8] sm:$0xff]
    %v85 = vadd.f32 %v81, %v83
    %v86 = vadd.f32 %v82, %v84
    %87 = vst.msk [vmem:[#allocation3] sm:$0xff] %vm35, %v85
    %88 = vst.msk [vmem:[#allocation3 + $0x8] sm:$0xff] %vm35, %v86
    // Predicated region
    $region26: #{multi_attn_forward.5} parent=1 // pred_check
      _
    $region27: #{multi_attn_forward.5} parent=1 // pred_check_branch
      %90 = sbr.rel (0) target = $region29
    $region28: #{multi_attn_forward.5} parent=1 // pred_region
      %92 = vsyncadd [#allocation4], 0
      %s93 = sshll.u32 [#allocation3], 4
      %s94 = int_to_ptr.vmem [resolvable:$true] %s93
      %s95 = sshll.u32 %s6, 4
      %s96 = int_to_ptr.hbm [resolvable:$true] %s95
      %101 = dma.vmem_to_hbm [thread:$0]  %s94, 256, %s96, [#allocation4], 128, 128, 8
    $region29: #{multi_attn_forward.5} parent=1 // pred_fallthru
      _
    // Predicated region
    $region30: #{multi_attn_forward.5} parent=1 // pred_check
      _
    $region31: #{multi_attn_forward.5} parent=1 // pred_check_branch
      %103 = sbr.rel (0) target = $region33
    $region32: #{multi_attn_forward.5} parent=1 // pred_region
      %105 = dma.done [#allocation4], 256
    $region33: #{multi_attn_forward.5} parent=1 // pred_fallthru
      _
    %106 = vsyncpa [#allocation4], 1

// kernel: multi_attn_forward.4
$region0: #{multi_attn_forward.4}
  #allocation0 [shape = 'u32[]', space=smem, size = 0x4, offset = 0x4, fixed_abs, tag = 'smem constant byte address 0x4 - core index']
  #allocation1 [shape = 'u32[72,128]{1,0:T(1,128)}', space=vmem, size = 0x9000, scoped, tag = 'internal scratch']
  %s0 = inlined_call_operand.vmem [shape: f32[8,8,8], index: 0, kind: input, shape index: {}]
  %s1 = inlined_call_operand.vmem [shape: f32[8,8,8], index: 1, kind: input, shape index: {}]
  %s2 = inlined_call_operand.vmem [shape: f32[8,8,8], index: 2, kind: input, shape index: {}]
  %s3 = inlined_call_operand.vmem [shape: f32[8,8,8], index: 3, kind: input, shape index: {}]
  %s4 = inlined_call_operand.hbm [shape: f32[8,8,8], index: 4, kind: output, shape index: {0}]
  %s5 = inlined_call_operand.vmem [shape: f32[8,8,8], index: 5, kind: output, shape index: {1}]
  %6 = xla_tuple %s4, %s5
  %s7 = sld [smem:[#allocation0]]
  $region57: #{multi_attn_forward.4} parent=0
    _
  %s9 = ssub.s32 1, %s7
  %s10 = scalar_select 0, %s9, %s7
  $region1: #{multi_attn_forward.4} parent=0
    #allocation2 [shape = 'u8[32768]{0}', space=vmem, size = 0x8000, scoped, tag = 'output window, operand 0']
    #allocation3 [shape = 's32[2]{0}', space=sflag, size = 0x8, scoped, tag = 'scoped memory for multi_attn_forward.4']
    %11 = vsyncpa [#allocation3], 0
    %s12 = scalar_lea.sflag [#allocation3], 1
    %13 = vsyncpa %s12, 0
    loop: start=0, step=1, limit=4
    $region2: #{multi_attn_forward.4} parent=1 // loop_pre_header
      _
    $region3: #{multi_attn_forward.4} parent=1 // loop_header
      %s15 = sphi 0, %s19
      %p16 = scmp.ge.s32.totalorder %s15, 4
      %s25 = sphi 0, %s27
      %s28 = sphi 0, %s25
      %s29 = sphi 0, %s28
      %s45 = sphi 0, %s29
      %s51 = sphi 0, %s53
      %s54 = sphi 0, %s51
      %s55 = sphi 0, %s54
      %s71 = sphi 0, %s55
      %s77 = sphi 0, %s79
      %s80 = sphi 0, %s77
      %s81 = sphi 0, %s80
      %s97 = sphi 0, %s81
      %s103 = sphi 0, %s105
      %s106 = sphi 0, %s103
      %s107 = sphi 0, %s106
      %s123 = sphi 0, %s107
      %s129 = sphi 0, %s131
      %s132 = sphi 0, %s129
      %s133 = sphi 0, %s132
      %s149 = sphi 0, %s133
      %s155 = sphi 0, %s157
      %s158 = sphi 0, %s155
      %s159 = sphi 0, %s158
      %s175 = sphi 0, %s159
    $region4: #{multi_attn_forward.4} parent=1 // loop_header_branch
      %18 = sbr.rel (%p16) target = $region8
    $region5: #{multi_attn_forward.4} parent=1 // loop_body
      %s20 = ssub.s32 %s15, 1
      %s21 = ssub.s32 %s15, 2
      %s22 = sadd.s32 %s15, 1
      %s23 = ssub.s32 %s15, %s22
      %p24 = scmp.eq.s32.totalorder %s23, 0
      %s26 = sadd.s32 %s25, 1
      %s27 = scalar_select %p24, %s25, %s26
      %p30 = pneg %p24
      %p31 = scmp.eq.s32.totalorder %s15, 1
      %p32 = por %p30, %p31
      %p33 = scmp.ne.s32.totalorder %s25, %s28
      %p34 = scmp.eq.s32.totalorder %s15, 0
      %p35 = por %p33, %p34
      %p36 = scmp.ne.s32.totalorder %s25, %s28
      %p37 = scmp.eq.s32.totalorder %s20, 1
      %p38 = por %p36, %p37
      %p39 = scmp.ne.s32.totalorder %s28, %s29
      %p40 = scmp.eq.s32.totalorder %s20, 0
      %p41 = por %p39, %p40
      %p42 = scmp.ne.s32.totalorder %s28, %s29
      %p43 = scmp.eq.s32.totalorder %s21, 1
      %p44 = por %p42, %p43
      %p46 = scmp.ne.s32.totalorder %s29, %s45
      %p47 = scmp.eq.s32.totalorder %s21, 0
      %p48 = por %p46, %p47
      %s49 = ssub.s32 %s15, %s22
      %p50 = scmp.eq.s32.totalorder %s49, 0
      %s52 = sadd.s32 %s51, 1
      %s53 = scalar_select %p50, %s51, %s52
      %p56 = pneg %p50
      %p57 = scmp.eq.s32.totalorder %s15, 1
      %p58 = por %p56, %p57
      %p59 = scmp.ne.s32.totalorder %s51, %s54
      %p60 = scmp.eq.s32.totalorder %s15, 0
      %p61 = por %p59, %p60
      %p62 = scmp.ne.s32.totalorder %s51, %s54
      %p63 = scmp.eq.s32.totalorder %s20, 1
      %p64 = por %p62, %p63
      %p65 = scmp.ne.s32.totalorder %s54, %s55
      %p66 = scmp.eq.s32.totalorder %s20, 0
      %p67 = por %p65, %p66
      %p68 = scmp.ne.s32.totalorder %s54, %s55
      %p69 = scmp.eq.s32.totalorder %s21, 1
      %p70 = por %p68, %p69
      %p72 = scmp.ne.s32.totalorder %s55, %s71
      %p73 = scmp.eq.s32.totalorder %s21, 0
      %p74 = por %p72, %p73
      %s75 = ssub.s32 %s15, %s22
      %p76 = scmp.eq.s32.totalorder %s75, 0
      %s78 = sadd.s32 %s77, 1
      %s79 = scalar_select %p76, %s77, %s78
      %p82 = pneg %p76
      %p83 = scmp.eq.s32.totalorder %s15, 1
      %p84 = por %p82, %p83
      %p85 = scmp.ne.s32.totalorder %s77, %s80
      %p86 = scmp.eq.s32.totalorder %s15, 0
      %p87 = por %p85, %p86
      %p88 = scmp.ne.s32.totalorder %s77, %s80
      %p89 = scmp.eq.s32.totalorder %s20, 1
      %p90 = por %p88, %p89
      %p91 = scmp.ne.s32.totalorder %s80, %s81
      %p92 = scmp.eq.s32.totalorder %s20, 0
      %p93 = por %p91, %p92
      %p94 = scmp.ne.s32.totalorder %s80, %s81
      %p95 = scmp.eq.s32.totalorder %s21, 1
      %p96 = por %p94, %p95
      %p98 = scmp.ne.s32.totalorder %s81, %s97
      %p99 = scmp.eq.s32.totalorder %s21, 0
      %p100 = por %p98, %p99
      %s101 = ssub.s32 %s15, %s22
      %p102 = scmp.eq.s32.totalorder %s101, 0
      %s104 = sadd.s32 %s103, 1
      %s105 = scalar_select %p102, %s103, %s104
      %p108 = pneg %p102
      %p109 = scmp.eq.s32.totalorder %s15, 1
      %p110 = por %p108, %p109
      %p111 = scmp.ne.s32.totalorder %s103, %s106
      %p112 = scmp.eq.s32.totalorder %s15, 0
      %p113 = por %p111, %p112
      %p114 = scmp.ne.s32.totalorder %s103, %s106
      %p115 = scmp.eq.s32.totalorder %s20, 1
      %p116 = por %p114, %p115
      %p117 = scmp.ne.s32.totalorder %s106, %s107
      %p118 = scmp.eq.s32.totalorder %s20, 0
      %p119 = por %p117, %p118
      %p120 = scmp.ne.s32.totalorder %s106, %s107
      %p121 = scmp.eq.s32.totalorder %s21, 1
      %p122 = por %p120, %p121
      %p124 = scmp.ne.s32.totalorder %s107, %s123
      %p125 = scmp.eq.s32.totalorder %s21, 0
      %p126 = por %p124, %p125
      %s127 = ssub.s32 %s15, %s22
      %p128 = scmp.eq.s32.totalorder %s127, 0
      %s130 = sadd.s32 %s129, 1
      %s131 = scalar_select %p128, %s129, %s130
      %p134 = pneg %p128
      %p135 = scmp.eq.s32.totalorder %s15, 1
      %p136 = por %p134, %p135
      %p137 = scmp.ne.s32.totalorder %s129, %s132
      %p138 = scmp.eq.s32.totalorder %s15, 0
      %p139 = por %p137, %p138
      %p140 = scmp.ne.s32.totalorder %s129, %s132
      %p141 = scmp.eq.s32.totalorder %s20, 1
      %p142 = por %p140, %p141
      %p143 = scmp.ne.s32.totalorder %s132, %s133
      %p144 = scmp.eq.s32.totalorder %s20, 0
      %p145 = por %p143, %p144
      %p146 = scmp.ne.s32.totalorder %s132, %s133
      %p147 = scmp.eq.s32.totalorder %s21, 1
      %p148 = por %p146, %p147
      %p150 = scmp.ne.s32.totalorder %s133, %s149
      %p151 = scmp.eq.s32.totalorder %s21, 0
      %p152 = por %p150, %p151
      %s153 = ssub.s32 %s15, %s22
      %p154 = scmp.eq.s32.totalorder %s153, 0
      %s156 = sadd.s32 %s155, 1
      %s157 = scalar_select %p154, %s155, %s156
      %p160 = pneg %p154
      %p161 = scmp.eq.s32.totalorder %s15, 1
      %p162 = por %p160, %p161
      %p163 = scmp.ne.s32.totalorder %s155, %s158
      %p164 = scmp.eq.s32.totalorder %s15, 0
      %p165 = por %p163, %p164
      %p166 = scmp.ne.s32.totalorder %s155, %s158
      %p167 = scmp.eq.s32.totalorder %s20, 1
      %p168 = por %p166, %p167
      %p169 = scmp.ne.s32.totalorder %s158, %s159
      %p170 = scmp.eq.s32.totalorder %s20, 0
      %p171 = por %p169, %p170
      %p172 = scmp.ne.s32.totalorder %s158, %s159
      %p173 = scmp.eq.s32.totalorder %s21, 1
      %p174 = por %p172, %p173
      %p176 = scmp.ne.s32.totalorder %s159, %s175
      %p177 = scmp.eq.s32.totalorder %s21, 0
      %p178 = por %p176, %p177
      %p179 = scmp.le.s32.totalorder 1, %s15
      %p180 = scmp.lt.s32.totalorder %s15, 3
      %p181 = pnand %p179, %p180
      %p182 = pneg %p181
      // Predicated region
      $region9: #{multi_attn_forward.4} parent=5 // pred_check
        _
      $region10: #{multi_attn_forward.4} parent=5 // pred_check_branch
        %184 = sbr.rel (%p181) target = $region12
      $region11: #{multi_attn_forward.4} parent=5 // pred_region
        %s185 = ssub.s32 %s15, 1
      $region12: #{multi_attn_forward.4} parent=5 // pred_fallthru
        _
      %p186 = scmp.lt.s32.totalorder %s15, 2
      // Predicated region
      $region13: #{multi_attn_forward.4} parent=5 // pred_check
        %p187 = pneg %p186
      $region14: #{multi_attn_forward.4} parent=5 // pred_check_branch
        %189 = sbr.rel (%p187) target = $region16
      $region15: #{multi_attn_forward.4} parent=5 // pred_region
        // Predicated region
        $region17: #{multi_attn_forward.4} parent=15 // pred_check
          %p190 = pneg %p35
        $region18: #{multi_attn_forward.4} parent=15 // pred_check_branch
          %192 = sbr.rel (%p190) target = $region20
        $region19: #{multi_attn_forward.4} parent=15 // pred_region
          %s193 = smul.u32 4, %s15
          %p194 = scmp.lt.s32.totalorder %s193, 7
          %s195 = scalar_select %p194, %s193, 7
          %s196 = smul.addr %s195, 8
          %s197 = scalar_lea.vmem %s0, %s196
          %s198 = smul.u32 4, %s15
        $region20: #{multi_attn_forward.4} parent=15 // pred_fallthru
          _
        // Predicated region
        $region21: #{multi_attn_forward.4} parent=15 // pred_check
          %p199 = pneg %p61
        $region22: #{multi_attn_forward.4} parent=15 // pred_check_branch
          %201 = sbr.rel (%p199) target = $region24
        $region23: #{multi_attn_forward.4} parent=15 // pred_region
          %s202 = smul.u32 4, %s15
          %p203 = scmp.lt.s32.totalorder %s202, 7
          %s204 = scalar_select %p203, %s202, 7
          %s205 = smul.addr %s204, 8
          %s206 = scalar_lea.vmem %s1, %s205
          %s207 = smul.u32 4, %s15
        $region24: #{multi_attn_forward.4} parent=15 // pred_fallthru
          _
        // Predicated region
        $region25: #{multi_attn_forward.4} parent=15 // pred_check
          %p208 = pneg %p87
        $region26: #{multi_attn_forward.4} parent=15 // pred_check_branch
          %210 = sbr.rel (%p208) target = $region28
        $region27: #{multi_attn_forward.4} parent=15 // pred_region
          %s211 = smul.u32 4, %s15
          %p212 = scmp.lt.s32.totalorder %s211, 7
          %s213 = scalar_select %p212, %s211, 7
          %s214 = smul.addr %s213, 8
          %s215 = scalar_lea.vmem %s2, %s214
          %s216 = smul.u32 4, %s15
        $region28: #{multi_attn_forward.4} parent=15 // pred_fallthru
          _
        // Predicated region
        $region29: #{multi_attn_forward.4} parent=15 // pred_check
          %p217 = pneg %p113
        $region30: #{multi_attn_forward.4} parent=15 // pred_check_branch
          %219 = sbr.rel (%p217) target = $region32
        $region31: #{multi_attn_forward.4} parent=15 // pred_region
          %s220 = smul.u32 4, %s15
          %p221 = scmp.lt.s32.totalorder %s220, 7
          %s222 = scalar_select %p221, %s220, 7
          %s223 = smul.addr %s222, 8
          %s224 = scalar_lea.vmem %s3, %s223
          %s225 = smul.u32 4, %s15
        $region32: #{multi_attn_forward.4} parent=15 // pred_fallthru
          _
      $region16: #{multi_attn_forward.4} parent=5 // pred_fallthru
        _
      %p226 = scmp.le.s32.totalorder 1, %s15
      %p227 = scmp.lt.s32.totalorder %s15, 3
      %p228 = pnand %p226, %p227
      %p229 = pneg %p228
      // Predicated region
      $region33: #{multi_attn_forward.4} parent=5 // pred_check
        _
      $region34: #{multi_attn_forward.4} parent=5 // pred_check_branch
        %231 = sbr.rel (%p228) target = $region36
      $region35: #{multi_attn_forward.4} parent=5 // pred_region
        %s232 = ssub.s32 %s15, 1
        %s233 = smul.u32 4, %s20
        %p234 = scmp.lt.s32.totalorder %s233, 7
        %s235 = scalar_select %p234, %s233, 7
        %s236 = smul.addr %s235, 8
        %s237 = scalar_lea.vmem %s0, %s236
        %p238 = pneg %p41
        %p239 = pneg %p38
        %s240 = smul.u32 4, %s20
        %p241 = scmp.lt.s32.totalorder %s240, 7
        %s242 = scalar_select %p241, %s240, 7
        %s243 = smul.addr %s242, 8
        %s244 = scalar_lea.vmem %s1, %s243
        %p245 = pneg %p67
        %p246 = pneg %p64
        %s247 = smul.u32 4, %s20
        %p248 = scmp.lt.s32.totalorder %s247, 7
        %s249 = scalar_select %p248, %s247, 7
        %s250 = smul.addr %s249, 8
        %s251 = scalar_lea.vmem %s2, %s250
        %p252 = pneg %p93
        %p253 = pneg %p90
        %s254 = smul.u32 4, %s20
        %p255 = scmp.lt.s32.totalorder %s254, 7
        %s256 = scalar_select %p255, %s254, 7
        %s257 = smul.addr %s256, 8
        %s258 = scalar_lea.vmem %s3, %s257
        %p259 = pneg %p119
        %p260 = pneg %p116
        %p261 = pneg %p145
        %p262 = pneg %p142
        %s263 = sand.u32 %s132, 1
        %s264 = scalar_lea.sflag [#allocation3], %s263
        %s265 = sand.u32 %s132, 1
        %s266 = smul.addr %s265, 32
        %s267 = scalar_lea.vmem [#allocation2], %s266
        %p268 = pneg %p171
        %p269 = pneg %p168
        %s270 = smul.u32 4, %s20
        %p271 = scmp.lt.s32.totalorder %s270, 7
        %s272 = scalar_select %p271, %s270, 7
        %s273 = smul.addr %s272, 8
        %s274 = scalar_lea.vmem %s5, %s273
        %s275 = smul.u32 4, %s20
        %p276 = scmp.lt.s32.totalorder %s275, 7
        %s277 = scalar_select %p276, %s275, 7
        %s278 = smul.addr %s277, 8
        %s279 = scalar_lea.vmem %s0, %s278
        %s280 = smul.u32 4, %s20
        %s281 = smul.u32 4, %s20
        %p282 = scmp.lt.s32.totalorder %s281, 7
        %s283 = scalar_select %p282, %s281, 7
        %s284 = smul.addr %s283, 8
        %s285 = scalar_lea.vmem %s1, %s284
        %s286 = smul.u32 4, %s20
        %s287 = smul.u32 4, %s20
        %p288 = scmp.lt.s32.totalorder %s287, 7
        %s289 = scalar_select %p288, %s287, 7
        %s290 = smul.addr %s289, 8
        %s291 = scalar_lea.vmem %s2, %s290
        %s292 = smul.u32 4, %s20
        %s293 = smul.u32 4, %s20
        %p294 = scmp.lt.s32.totalorder %s293, 7
        %s295 = scalar_select %p294, %s293, 7
        %s296 = smul.addr %s295, 8
        %s297 = scalar_lea.vmem %s3, %s296
        %s298 = smul.u32 4, %s20
        %s299 = smul.u32 4, %s20
        %s300 = smul.u32 4, %s20
        %p301 = scmp.lt.s32.totalorder %s300, 7
        %s302 = scalar_select %p301, %s300, 7
        %s303 = smul.addr %s302, 8
        %s304 = scalar_lea.vmem %s5, %s303
        %s305 = smul.u32 4, %s20
        %v306 = vld [vmem:[%s279] sm:$0xff]
        %v307 = vld [vmem:[%s279 + $0x8] sm:$0xff]
        %v308 = vld [vmem:[%s279 + $0x10] sm:$0xff]
        %v309 = vld [vmem:[%s279 + $0x18] sm:$0xff]
        %v310 = vld [vmem:[%s285] sm:$0xff]
        %v311 = vld [vmem:[%s285 + $0x8] sm:$0xff]
        %v312 = vld [vmem:[%s285 + $0x10] sm:$0xff]
        %v313 = vld [vmem:[%s285 + $0x18] sm:$0xff]
        %v314 = vld [vmem:[%s291] sm:$0xff]
        %v315 = vld [vmem:[%s291 + $0x8] sm:$0xff]
        %v316 = vld [vmem:[%s291 + $0x10] sm:$0xff]
        %v317 = vld [vmem:[%s291 + $0x18] sm:$0xff]
        %vm318 = vcmask 64512
        %v320 = vsel %vm318, %v306, 0
        %v323 = vsel %vm318, %v310, 0
        %325 = vmatpush.xpose.msra.mxu0 0.0
        %326 = vmatpush.xpose.msra.mxu0 0.0
        %327 = vmatpush.xpose.msra.mxu0 0.0
        %328 = vmatpush.xpose.msra.mxu0 0.0
        %329 = vmatpush.xpose.msra.mxu0 0.0
        %330 = vmatpush.xpose.msra.mxu0 0.0
        %331 = vmatpush.xpose.msra.mxu0 0.0
        %332 = vmatpush.xpose.msra.mxu0 0.0
        %333 = vmatpush.xpose.msra.mxu0 0.0
        %334 = vmatpush.xpose.msra.mxu0 0.0
        %335 = vmatpush.xpose.msra.mxu0 0.0
        %336 = vmatpush.xpose.msra.mxu0 0.0
        %337 = vmatpush.xpose.msra.mxu0 0.0
        %338 = vmatpush.xpose.msra.mxu0 0.0
        %339 = vmatpush.xpose.msra.mxu0 0.0
        %340 = vmatpush.xpose.msra.mxu0 %v323
        %341 = vmatmul.f32.gmra.mxu0 %v320
        %v342 = vpop.f32.mrf.mxu0
        %v343 = vadd.f32 0.0, %v342
        %344 = vdwg.mxu0
        %v346 = vsel %vm318, %v307, 0
        %v349 = vsel %vm318, %v311, 0
        %351 = vmatpush.xpose.msra.mxu0 0.0
        %352 = vmatpush.xpose.msra.mxu0 0.0
        %353 = vmatpush.xpose.msra.mxu0 0.0
        %354 = vmatpush.xpose.msra.mxu0 0.0
        %355 = vmatpush.xpose.msra.mxu0 0.0
        %356 = vmatpush.xpose.msra.mxu0 0.0
        %357 = vmatpush.xpose.msra.mxu0 0.0
        %358 = vmatpush.xpose.msra.mxu0 0.0
        %359 = vmatpush.xpose.msra.mxu0 0.0
        %360 = vmatpush.xpose.msra.mxu0 0.0
        %361 = vmatpush.xpose.msra.mxu0 0.0
        %362 = vmatpush.xpose.msra.mxu0 0.0
        %363 = vmatpush.xpose.msra.mxu0 0.0
        %364 = vmatpush.xpose.msra.mxu0 0.0
        %365 = vmatpush.xpose.msra.mxu0 0.0
        %366 = vmatpush.xpose.msra.mxu0 %v349
        %367 = vmatmul.f32.gmra.mxu0 %v346
        %v368 = vpop.f32.mrf.mxu0
        %v369 = vadd.f32 0.0, %v368
        %370 = vdwg.mxu0
        %v372 = vsel %vm318, %v308, 0
        %v375 = vsel %vm318, %v312, 0
        %377 = vmatpush.xpose.msra.mxu0 0.0
        %378 = vmatpush.xpose.msra.mxu0 0.0
        %379 = vmatpush.xpose.msra.mxu0 0.0
        %380 = vmatpush.xpose.msra.mxu0 0.0
        %381 = vmatpush.xpose.msra.mxu0 0.0
        %382 = vmatpush.xpose.msra.mxu0 0.0
        %383 = vmatpush.xpose.msra.mxu0 0.0
        %384 = vmatpush.xpose.msra.mxu0 0.0
        %385 = vmatpush.xpose.msra.mxu0 0.0
        %386 = vmatpush.xpose.msra.mxu0 0.0
        %387 = vmatpush.xpose.msra.mxu0 0.0
        %388 = vmatpush.xpose.msra.mxu0 0.0
        %389 = vmatpush.xpose.msra.mxu0 0.0
        %390 = vmatpush.xpose.msra.mxu0 0.0
        %391 = vmatpush.xpose.msra.mxu0 0.0
        %392 = vmatpush.xpose.msra.mxu0 %v375
        %393 = vmatmul.f32.gmra.mxu0 %v372
        %v394 = vpop.f32.mrf.mxu0
        %v395 = vadd.f32 0.0, %v394
        %396 = vdwg.mxu0
        %v398 = vsel %vm318, %v309, 0
        %v401 = vsel %vm318, %v313, 0
        %403 = vmatpush.xpose.msra.mxu0 0.0
        %404 = vmatpush.xpose.msra.mxu0 0.0
        %405 = vmatpush.xpose.msra.mxu0 0.0
        %406 = vmatpush.xpose.msra.mxu0 0.0
        %407 = vmatpush.xpose.msra.mxu0 0.0
        %408 = vmatpush.xpose.msra.mxu0 0.0
        %409 = vmatpush.xpose.msra.mxu0 0.0
        %410 = vmatpush.xpose.msra.mxu0 0.0
        %411 = vmatpush.xpose.msra.mxu0 0.0
        %412 = vmatpush.xpose.msra.mxu0 0.0
        %413 = vmatpush.xpose.msra.mxu0 0.0
        %414 = vmatpush.xpose.msra.mxu0 0.0
        %415 = vmatpush.xpose.msra.mxu0 0.0
        %416 = vmatpush.xpose.msra.mxu0 0.0
        %417 = vmatpush.xpose.msra.mxu0 0.0
        %418 = vmatpush.xpose.msra.mxu0 %v401
        %419 = vmatmul.f32.gmra.mxu0 %v398
        %v420 = vpop.f32.mrf.mxu0
        %v421 = vadd.f32 0.0, %v420
        %422 = vdwg.mxu0
        %v423 = vmul.f32 %v343, 0.35355338
        %v424 = vmul.f32 %v369, 0.35355338
        %v425 = vmul.f32 %v395, 0.35355338
        %v426 = vmul.f32 %v421, 0.35355338
        %v427 = vld [vmem:[%s297] sm:$0xff]
        %v428 = vld [vmem:[%s297 + $0x8] sm:$0xff]
        %v429 = vld [vmem:[%s297 + $0x10] sm:$0xff]
        %v430 = vld [vmem:[%s297 + $0x18] sm:$0xff]
        %vm431 = vcmp.gt.f32.partialorder %v427, 0.0
        %vm432 = vcmp.gt.f32.partialorder %v428, 0.0
        %vm433 = vcmp.gt.f32.partialorder %v429, 0.0
        %vm434 = vcmp.gt.f32.partialorder %v430, 0.0
        %v435 = vsel %vm431, -inf, %v423
        %v436 = vsel %vm432, -inf, %v424
        %v437 = vsel %vm433, -inf, %v425
        %v438 = vsel %vm434, -inf, %v426
        %v439 = vsel %vm318, %v435, -inf
        %440 = vmax.xlane.f32.xlu0 %v439
        %v441 = vpop.xlane.xlu0 %440
        %v442 = vsel %vm318, %v436, -inf
        %443 = vmax.xlane.f32.xlu0 %v442
        %v444 = vpop.xlane.xlu0 %443
        %v445 = vsel %vm318, %v437, -inf
        %446 = vmax.xlane.f32.xlu0 %v445
        %v447 = vpop.xlane.xlu0 %446
        %v448 = vsel %vm318, %v438, -inf
        %449 = vmax.xlane.f32.xlu0 %v448
        %v450 = vpop.xlane.xlu0 %449
        %v451 = vsub.f32 %v435, %v441
        %v452 = vsub.f32 %v436, %v444
        %v453 = vsub.f32 %v437, %v447
        %v454 = vsub.f32 %v438, %v450
        %v455 = vmul.f32 %v451, 1.442695
        %v456 = vpow.pop %v455
        %v457 = vmul.f32 %v452, 1.442695
        %v458 = vpow.pop %v457
        %v459 = vmul.f32 %v453, 1.442695
        %v460 = vpow.pop %v459
        %v461 = vmul.f32 %v454, 1.442695
        %v462 = vpow.pop %v461
        %v463 = vsel %vm318, %v456, 0.0
        %464 = vadd.xlane.f32.xlu0 %v463
        %v465 = vpop.xlane.xlu0 %464
        %v466 = vsel %vm318, %v458, 0.0
        %467 = vadd.xlane.f32.xlu0 %v466
        %v468 = vpop.xlane.xlu0 %467
        %v469 = vsel %vm318, %v460, 0.0
        %470 = vadd.xlane.f32.xlu0 %v469
        %v471 = vpop.xlane.xlu0 %470
        %v472 = vsel %vm318, %v462, 0.0
        %473 = vadd.xlane.f32.xlu0 %v472
        %v474 = vpop.xlane.xlu0 %473
        %v475 = vrcp.pop %v465
        %v476 = vmul.f32 %v465, %v475
        %v477 = vsub.f32 1.0, %v476
        %v478 = vmul.f32 %v475, %v477
        %v479 = vadd.f32 %v475, %v478
        %vm480 = vweird.f32 %v465
        %vm481 = vweird.f32 %v475
        %vm482 = vmor %vm480, %vm481
        %v483 = vsel %vm482, %v475, %v479
        %v484 = vand.u32 2147483647, %v465
        %vm485 = vcmp.eq.f32.partialorder %v484, 8.507059e+37
        %v486 = vand.u32 %v465, 2147483648
        %v487 = vor.u32 1.1754944e-38, %v486
        %v488 = vsel %vm485, %v487, %v483
        %v489 = vmul.f32 %v456, %v488
        %v490 = vrcp.pop %v468
        %v491 = vmul.f32 %v468, %v490
        %v492 = vsub.f32 1.0, %v491
        %v493 = vmul.f32 %v490, %v492
        %v494 = vadd.f32 %v490, %v493
        %vm495 = vweird.f32 %v468
        %vm496 = vweird.f32 %v490
        %vm497 = vmor %vm495, %vm496
        %v498 = vsel %vm497, %v490, %v494
        %v499 = vand.u32 2147483647, %v468
        %vm500 = vcmp.eq.f32.partialorder %v499, 8.507059e+37
        %v501 = vand.u32 %v468, 2147483648
        %v502 = vor.u32 1.1754944e-38, %v501
        %v503 = vsel %vm500, %v502, %v498
        %v504 = vmul.f32 %v458, %v503
        %v505 = vrcp.pop %v471
        %v506 = vmul.f32 %v471, %v505
        %v507 = vsub.f32 1.0, %v506
        %v508 = vmul.f32 %v505, %v507
        %v509 = vadd.f32 %v505, %v508
        %vm510 = vweird.f32 %v471
        %vm511 = vweird.f32 %v505
        %vm512 = vmor %vm510, %vm511
        %v513 = vsel %vm512, %v505, %v509
        %v514 = vand.u32 2147483647, %v471
        %vm515 = vcmp.eq.f32.partialorder %v514, 8.507059e+37
        %v516 = vand.u32 %v471, 2147483648
        %v517 = vor.u32 1.1754944e-38, %v516
        %v518 = vsel %vm515, %v517, %v513
        %v519 = vmul.f32 %v460, %v518
        %v520 = vrcp.pop %v474
        %v521 = vmul.f32 %v474, %v520
        %v522 = vsub.f32 1.0, %v521
        %v523 = vmul.f32 %v520, %v522
        %v524 = vadd.f32 %v520, %v523
        %vm525 = vweird.f32 %v474
        %vm526 = vweird.f32 %v520
        %vm527 = vmor %vm525, %vm526
        %v528 = vsel %vm527, %v520, %v524
        %v529 = vand.u32 2147483647, %v474
        %vm530 = vcmp.eq.f32.partialorder %v529, 8.507059e+37
        %v531 = vand.u32 %v474, 2147483648
        %v532 = vor.u32 1.1754944e-38, %v531
        %v533 = vsel %vm530, %v532, %v528
        %v534 = vmul.f32 %v462, %v533
        %535 = vst.msk [vmem:[%s267] sm:$0xff] %vm318, %v489
        %536 = vst.msk [vmem:[%s267 + $0x8] sm:$0xff] %vm318, %v504
        %537 = vst.msk [vmem:[%s267 + $0x10] sm:$0xff] %vm318, %v519
        %538 = vst.msk [vmem:[%s267 + $0x18] sm:$0xff] %vm318, %v534
        %v540 = vsel %vm318, %v489, 0
        %542 = vmatpush.msra.mxu0 0.0
        %543 = vmatpush.msra.mxu0 0.0
        %544 = vmatpush.msra.mxu0 0.0
        %545 = vmatpush.msra.mxu0 0.0
        %546 = vmatpush.msra.mxu0 0.0
        %547 = vmatpush.msra.mxu0 0.0
        %548 = vmatpush.msra.mxu0 0.0
        %549 = vmatpush.msra.mxu0 0.0
        %550 = vmatpush.msra.mxu0 0.0
        %551 = vmatpush.msra.mxu0 0.0
        %552 = vmatpush.msra.mxu0 0.0
        %553 = vmatpush.msra.mxu0 0.0
        %554 = vmatpush.msra.mxu0 0.0
        %555 = vmatpush.msra.mxu0 0.0
        %556 = vmatpush.msra.mxu0 0.0
        %557 = vmatpush.msra.mxu0 %v314
        %558 = vmatmul.f32.gmra.mxu0 %v540
        %v559 = vpop.f32.mrf.mxu0
        %v560 = vadd.f32 0.0, %v559
        %561 = vdwg.mxu0
        %v563 = vsel %vm318, %v504, 0
        %565 = vmatpush.msra.mxu0 0.0
        %566 = vmatpush.msra.mxu0 0.0
        %567 = vmatpush.msra.mxu0 0.0
        %568 = vmatpush.msra.mxu0 0.0
        %569 = vmatpush.msra.mxu0 0.0
        %570 = vmatpush.msra.mxu0 0.0
        %571 = vmatpush.msra.mxu0 0.0
        %572 = vmatpush.msra.mxu0 0.0
        %573 = vmatpush.msra.mxu0 0.0
        %574 = vmatpush.msra.mxu0 0.0
        %575 = vmatpush.msra.mxu0 0.0
        %576 = vmatpush.msra.mxu0 0.0
        %577 = vmatpush.msra.mxu0 0.0
        %578 = vmatpush.msra.mxu0 0.0
        %579 = vmatpush.msra.mxu0 0.0
        %580 = vmatpush.msra.mxu0 %v315
        %581 = vmatmul.f32.gmra.mxu0 %v563
        %v582 = vpop.f32.mrf.mxu0
        %v583 = vadd.f32 0.0, %v582
        %584 = vdwg.mxu0
        %v586 = vsel %vm318, %v519, 0
        %588 = vmatpush.msra.mxu0 0.0
        %589 = vmatpush.msra.mxu0 0.0
        %590 = vmatpush.msra.mxu0 0.0
        %591 = vmatpush.msra.mxu0 0.0
        %592 = vmatpush.msra.mxu0 0.0
        %593 = vmatpush.msra.mxu0 0.0
        %594 = vmatpush.msra.mxu0 0.0
        %595 = vmatpush.msra.mxu0 0.0
        %596 = vmatpush.msra.mxu0 0.0
        %597 = vmatpush.msra.mxu0 0.0
        %598 = vmatpush.msra.mxu0 0.0
        %599 = vmatpush.msra.mxu0 0.0
        %600 = vmatpush.msra.mxu0 0.0
        %601 = vmatpush.msra.mxu0 0.0
        %602 = vmatpush.msra.mxu0 0.0
        %603 = vmatpush.msra.mxu0 %v316
        %604 = vmatmul.f32.gmra.mxu0 %v586
        %v605 = vpop.f32.mrf.mxu0
        %v606 = vadd.f32 0.0, %v605
        %607 = vdwg.mxu0
        %v609 = vsel %vm318, %v534, 0
        %611 = vmatpush.msra.mxu0 0.0
        %612 = vmatpush.msra.mxu0 0.0
        %613 = vmatpush.msra.mxu0 0.0
        %614 = vmatpush.msra.mxu0 0.0
        %615 = vmatpush.msra.mxu0 0.0
        %616 = vmatpush.msra.mxu0 0.0
        %617 = vmatpush.msra.mxu0 0.0
        %618 = vmatpush.msra.mxu0 0.0
        %619 = vmatpush.msra.mxu0 0.0
        %620 = vmatpush.msra.mxu0 0.0
        %621 = vmatpush.msra.mxu0 0.0
        %622 = vmatpush.msra.mxu0 0.0
        %623 = vmatpush.msra.mxu0 0.0
        %624 = vmatpush.msra.mxu0 0.0
        %625 = vmatpush.msra.mxu0 0.0
        %626 = vmatpush.msra.mxu0 %v317
        %627 = vmatmul.f32.gmra.mxu0 %v609
        %v628 = vpop.f32.mrf.mxu0
        %v629 = vadd.f32 0.0, %v628
        %630 = vdwg.mxu0
        %631 = vst.msk [vmem:[%s304] sm:$0xff] %vm318, %v560
        %632 = vst.msk [vmem:[%s304 + $0x8] sm:$0xff] %vm318, %v583
        %633 = vst.msk [vmem:[%s304 + $0x10] sm:$0xff] %vm318, %v606
        %634 = vst.msk [vmem:[%s304 + $0x18] sm:$0xff] %vm318, %v629
        %s635 = sand.u32 %s132, 1
        %s636 = scalar_lea.sflag [#allocation3], %s635
        %s637 = sand.u32 %s132, 1
        %s638 = smul.addr %s637, 32
        %s639 = scalar_lea.vmem [#allocation2], %s638
        %s640 = smul.u32 4, %s20
        %p641 = scmp.lt.s32.totalorder %s640, 7
        %s642 = scalar_select %p641, %s640, 7
        %s643 = smul.addr %s642, 8
        %s644 = scalar_lea.vmem %s5, %s643
        // Predicated region
        $region37: #{multi_attn_forward.4} parent=35 // pred_check
          %p645 = pneg %p142
        $region38: #{multi_attn_forward.4} parent=35 // pred_check_branch
          %647 = sbr.rel (%p645) target = $region40
        $region39: #{multi_attn_forward.4} parent=35 // pred_region
          %s648 = smul.u32 4, %s20
          %650 = vsyncadd %s636, 0
          %s651 = smul.addr %s648, 8
          %s652 = scalar_lea.hbm %s4, %s651
          %s653 = sshll.u32 %s639, 4
          %s654 = int_to_ptr.vmem [resolvable:$true] %s653
          %s655 = sshll.u32 %s652, 4
          %s656 = int_to_ptr.hbm [resolvable:$true] %s655
          %661 = dma.vmem_to_hbm [thread:$0]  %s654, 512, %s656, %s636, 128, 128, 8
        $region40: #{multi_attn_forward.4} parent=35 // pred_fallthru
          _
        // Predicated region
        $region41: #{multi_attn_forward.4} parent=35 // pred_check
          %p662 = pneg %p168
        $region42: #{multi_attn_forward.4} parent=35 // pred_check_branch
          %664 = sbr.rel (%p662) target = $region44
        $region43: #{multi_attn_forward.4} parent=35 // pred_region
          %s665 = smul.u32 4, %s20
        $region44: #{multi_attn_forward.4} parent=35 // pred_fallthru
          _
      $region36: #{multi_attn_forward.4} parent=5 // pred_fallthru
        _
      %p666 = scmp.le.s32.totalorder 2, %s15
      // Predicated region
      $region45: #{multi_attn_forward.4} parent=5 // pred_check
        %p667 = pneg %p666
      $region46: #{multi_attn_forward.4} parent=5 // pred_check_branch
        %669 = sbr.rel (%p667) target = $region48
      $region47: #{multi_attn_forward.4} parent=5 // pred_region
        %s670 = ssub.s32 %s15, 2
        // Predicated region
        $region49: #{multi_attn_forward.4} parent=47 // pred_check
          %p671 = pneg %p148
        $region50: #{multi_attn_forward.4} parent=47 // pred_check_branch
          %673 = sbr.rel (%p671) target = $region52
        $region51: #{multi_attn_forward.4} parent=47 // pred_region
          %s674 = sand.u32 %s133, 1
          %s675 = scalar_lea.sflag [#allocation3], %s674
          %s676 = sand.u32 %s133, 1
          %s677 = smul.addr %s676, 32
          %s678 = scalar_lea.vmem [#allocation2], %s677
          %680 = dma.done %s675, 512
        $region52: #{multi_attn_forward.4} parent=47 // pred_fallthru
          _
        // Predicated region
        $region53: #{multi_attn_forward.4} parent=47 // pred_check
          %p681 = pneg %p174
        $region54: #{multi_attn_forward.4} parent=47 // pred_check_branch
          %683 = sbr.rel (%p681) target = $region56
        $region55: #{multi_attn_forward.4} parent=47 // pred_region
          %s684 = smul.u32 4, %s21
          %p685 = scmp.lt.s32.totalorder %s684, 7
          %s686 = scalar_select %p685, %s684, 7
          %s687 = smul.addr %s686, 8
          %s688 = scalar_lea.vmem %s5, %s687
        $region56: #{multi_attn_forward.4} parent=47 // pred_fallthru
          _
      $region48: #{multi_attn_forward.4} parent=5 // pred_fallthru
        _
    $region6: #{multi_attn_forward.4} parent=1 // loop_footer
      %s19 = sadd.s32 1, %s15
    $region7: #{multi_attn_forward.4} parent=1 // loop_footer_branch
      %14 = sbr.rel target = $region3
    $region8: #{multi_attn_forward.4} parent=1 // loop_exit
      _
    %689 = vsyncpa [#allocation3], 1
    %s690 = scalar_lea.sflag [#allocation3], 1
    %691 = vsyncpa %s690, 1

</llo_original>
